<compile_context>
chip_gen: v5e
topology: v5e:2x2
jax: 0.10.0
libtpu: 0.0.40
codegen_flags: <defaults>
</compile_context>

<pallas_src>
import jax
import jax.numpy as jnp
from jax import lax
from jax.experimental import pallas as pl
from jax.experimental.pallas import tpu as pltpu

_LANE = 128


def _round_up(a, m):
    return ((a + m - 1) // m) * m


def _pad_length(x, l_pad):
    _, _, l = x.shape
    if l_pad == l:
        return x
    return jnp.pad(x, ((0, 0), (0, 0), (0, l_pad - l)))


def _gate(s_sum, w1s_ref, b1_ref, w2_ref, b2_ref):
    """Excitation MLP applied to the length-summed squeeze (1/L folded into w1s).

    Contractions are over the shared channel axis of both operands, so no .T /
    relayout feeds the MXU.  These matmuls are tiny (TB x C x SE) and hide
    under the DMA either way.
    """
    h = lax.dot_general(s_sum, w1s_ref[...], (((1,), (1,)), ((), ())),
                        preferred_element_type=jnp.float32)          # (TB, SE)
    h = jnp.maximum(h + b1_ref[...], 0.0)                            # ReLU
    g = lax.dot_general(h, w2_ref[...], (((1,), (1,)), ((), ())),
                        preferred_element_type=jnp.float32)          # (TB, C)
    return jax.nn.sigmoid(g + b2_ref[...])                           # (TB, C)


# ----------------------- single-pass (fused) kernel -----------------------
def se_block_fused_kernel(x_ref, w1s_ref, b1_ref, w2_ref, b2_ref, o_ref):
    # Squeeze: sum over the length (lane) axis.  Zero padding of L is harmless
    # because 1/L (true L) is folded into w1s.
    s = jnp.sum(x_ref[...].astype(jnp.float32), axis=-1)             # (TB, C)
    g = _gate(s, w1s_ref, b1_ref, w2_ref, b2_ref)                    # (TB, C)
    # Re-read x_ref for the scale pass instead of keeping the whole slab live
    # across the gate math: VMEM re-reads are cheap and vreg pressure stays low.
    o_ref[...] = x_ref[...] * g.astype(o_ref.dtype)[:, :, None]


# ----------------------- two-pass fallback kernels ------------------------
def se_gate_kernel(x_ref, w1s_ref, b1_ref, w2_ref, b2_ref, g_ref, acc_ref):
    l = pl.program_id(1)

    @pl.when(l == 0)
    def _():
        acc_ref[...] = jnp.zeros_like(acc_ref)

    acc_ref[...] += jnp.sum(x_ref[...].astype(jnp.float32), axis=-1)

    @pl.when(l == pl.num_programs(1) - 1)
    def _():
        g_ref[...] = _gate(acc_ref[...], w1s_ref, b1_ref, w2_ref, b2_ref)


def se_scale_kernel(x_ref, g_ref, o_ref):
    o_ref[...] = x_ref[...] * g_ref[...].astype(o_ref.dtype)[:, :, None]


# --------------------------------- wrapper --------------------------------
def se_block_forward(x, w1, b1, w2, b2, *,
                     block_budget_bytes=2 * 1024 * 1024,
                     vmem_limit_bytes=32 * 1024 * 1024,
                     force_two_pass=False):
    """SEBlock forward (lengths=None).

    x : (B, C, L) channels-first input, like the PyTorch module
    w1: (SE, C), b1: (SE,)    conv1 (kernel_size=1) weight / bias
    w2: (C, SE), b2: (C,)     conv2 (kernel_size=1) weight / bias
    returns (B, C, L) == sigmoid(conv2(relu(conv1(mean_L(x))))) * x
    """
    B, C, L = x.shape
    SE, Cw = w1.shape
    assert Cw == C
    Co, SEw = w2.shape
    assert SEw == SE and Co == C, "out_channels must equal in_channels for s * x"

    itemsize = jnp.dtype(x.dtype).itemsize

    # Fold 1/L into w1 (saves a VPU pass over the squeeze intermediate) and
    # reshape biases into lane-major (1, N) rows.
    w1s = w1.astype(jnp.float32) * (1.0 / L)
    b1r = b1.astype(jnp.float32).reshape(1, SE)
    b2r = b2.astype(jnp.float32).reshape(1, C)

    weight_specs = [
        pl.BlockSpec((SE, C), lambda *idx: (0, 0)),   # grid-invariant, stays in VMEM
        pl.BlockSpec((1, SE), lambda *idx: (0, 0)),
        pl.BlockSpec((C, SE), lambda *idx: (0, 0)),
        pl.BlockSpec((1, C), lambda *idx: (0, 0)),
    ]

    row_bytes_lane = C * _round_up(L, _LANE) * itemsize
    single_pass = (row_bytes_lane <= block_budget_bytes) and not force_two_pass

    if single_pass:
        # ---- fused path: x read from HBM exactly once ----
        L_pad = _round_up(L, _LANE)          # lane-dense unmasked stores
        xp = _pad_length(x, L_pad)
        row_bytes = C * L_pad * itemsize

        # VMEM-budget-driven batch tile: 4 x block bytes (input + output, each
        # double-buffered) must stay well under the scoped VMEM limit; aim for
        # >= 8 grid steps (>= 4 per TensorCore on v7x) so DMA / compute /
        # writeback overlap.  The tiny MXU matmuls never drive this choice.
        max_tile_b = max(1, block_budget_bytes // row_bytes)
        steps_tile_b = B // 8 if B >= 8 else 1        # guarantees >= 8 steps
        tile_b = max(1, min(max_tile_b, steps_tile_b, B))
        grid_b = pl.cdiv(B, tile_b)                   # padded tail rows are dropped

        out = pl.pallas_call(
            se_block_fused_kernel,
            out_shape=jax.ShapeDtypeStruct((B, C, L_pad), x.dtype),
            grid_spec=pltpu.PrefetchScalarGridSpec(
                num_scalar_prefetch=0,
                grid=(grid_b,),
                in_specs=[pl.BlockSpec((tile_b, C, L_pad), lambda i: (i, 0, 0))]
                         + weight_specs,
                out_specs=pl.BlockSpec((tile_b, C, L_pad), lambda i: (i, 0, 0)),
            ),
            compiler_params=pltpu.CompilerParams(
                dimension_semantics=("parallel",),
                vmem_limit_bytes=vmem_limit_bytes,
            ),
        )(xp, w1s, b1r, w2, b2r)
        return out[:, :, :L] if L_pad != L else out

    # ---- two-pass fallback: one (C, L) row exceeds the per-block budget ----
    # Pass 1 streams (tile_b, C, tile_l) tiles, accumulates the length sum in
    # VMEM scratch and emits g[B, C]; pass 2 streams x again and scales it.
    # Costs 1.5x the HBM traffic of the fused path but keeps blocks small.
    tile_l = max(_LANE, (block_budget_bytes // (C * itemsize)) // _LANE * _LANE)
    L_pad = _round_up(L, tile_l)             # multiple of tile_l (and of 128);
    xp = _pad_length(x, L_pad)               # zero pad -> sum unaffected
    grid_l = L_pad // tile_l
    tile_b = max(1, min(B, block_budget_bytes // (C * tile_l * itemsize)))
    grid_b = pl.cdiv(B, tile_b)

    g = pl.pallas_call(
        se_gate_kernel,
        out_shape=jax.ShapeDtypeStruct((B, C), jnp.float32),
        grid_spec=pltpu.PrefetchScalarGridSpec(
            num_scalar_prefetch=0,
            grid=(grid_b, grid_l),            # reduction (L) axis last
            in_specs=[pl.BlockSpec((tile_b, C, tile_l), lambda i, l: (i, 0, l))]
                     + weight_specs,
            out_specs=pl.BlockSpec((tile_b, C), lambda i, l: (i, 0)),
            scratch_shapes=[pltpu.VMEM((tile_b, C), jnp.float32)],
        ),
        compiler_params=pltpu.CompilerParams(
            dimension_semantics=("parallel", "arbitrary"),
            vmem_limit_bytes=vmem_limit_bytes,
        ),
    )(xp, w1s, b1r, w2, b2r)

    out = pl.pallas_call(
        se_scale_kernel,
        out_shape=jax.ShapeDtypeStruct((B, C, L_pad), x.dtype),
        grid_spec=pltpu.PrefetchScalarGridSpec(
            num_scalar_prefetch=0,
            grid=(grid_b, grid_l),
            in_specs=[pl.BlockSpec((tile_b, C, tile_l), lambda i, l: (i, 0, l)),
                      pl.BlockSpec((tile_b, C), lambda i, l: (i, 0))],
            out_specs=pl.BlockSpec((tile_b, C, tile_l), lambda i, l: (i, 0, l)),
        ),
        compiler_params=pltpu.CompilerParams(
            dimension_semantics=("parallel", "parallel"),
            vmem_limit_bytes=vmem_limit_bytes,
        ),
    )(xp, g)
    return out[:, :, :L] if L_pad != L else out


if __name__ == "__main__":
    # Shapes from the module docstring example: SEBlock(64, 16, 64) applied to
    # torch.rand([8, 120, 64]).transpose(1, 2) -> x of shape (8, 64, 120).
    # L = 120 also exercises the lane-dense padding path (120 -> 128).
    B, C, SE, L = 8, 64, 16, 120

    key = jax.random.PRNGKey(0)
    kx, k1, k2, k3, k4 = jax.random.split(key, 5)
    x = jax.random.normal(kx, (B, C, L), dtype=jnp.float32)
    w1 = jax.random.normal(k1, (SE, C), dtype=jnp.float32) * (1.0 / C) ** 0.5
    b1 = jax.random.normal(k2, (SE,), dtype=jnp.float32) * 0.1
    w2 = jax.random.normal(k3, (C, SE), dtype=jnp.float32) * (1.0 / SE) ** 0.5
    b2 = jax.random.normal(k4, (C,), dtype=jnp.float32) * 0.1

    def reference(xx):
        s = jnp.mean(xx, axis=-1)
        h = jnp.maximum(s @ w1.T + b1[None, :], 0.0)
        g = jax.nn.sigmoid(h @ w2.T + b2[None, :])
        return xx * g[:, :, None]

    # Single-pass (fused) path.
    out = jax.block_until_ready(se_block_forward(x, w1, b1, w2, b2))
    ref = reference(x)
    assert out.shape == (B, C, L)
    assert bool(jnp.all(jnp.isfinite(out)))
    err = float(jnp.max(jnp.abs(out - ref)))
    assert err < 1e-5, f"fused path max abs err {err}"

    # Two-pass fallback (what a v7x-sized C*L row would take): force it with a
    # tiny block budget so the length reduction spans several tiles.
    B2, L2 = 4, 300
    x2 = jax.random.normal(jax.random.PRNGKey(1), (B2, C, L2), dtype=jnp.float32)
    out2 = jax.block_until_ready(
        se_block_forward(x2, w1, b1, w2, b2,
                         force_two_pass=True, block_budget_bytes=32 * 1024))
    ref2 = reference(x2)
    assert out2.shape == (B2, C, L2)
    err2 = float(jnp.max(jnp.abs(out2 - ref2)))
    assert err2 < 1e-5, f"two-pass path max abs err {err2}"

    print("KERNEL_OK")
</pallas_src>

<mosaic_0001>
module attributes {stable_mosaic.version = 11 : i64} {
  func.func @se_block_fused_kernel(%arg0: i32, %arg1: memref<1x64x128xf32, #tpu.memory_space<vmem>>, %arg2: memref<16x64xf32, #tpu.memory_space<vmem>>, %arg3: memref<1x16xf32, #tpu.memory_space<vmem>>, %arg4: memref<64x16xf32, #tpu.memory_space<vmem>>, %arg5: memref<1x64xf32, #tpu.memory_space<vmem>>, %arg6: memref<1x64x128xf32, #tpu.memory_space<vmem>>) attributes {dimension_semantics = [#tpu.dimension_semantics<parallel>], iteration_bounds = array<i64: 8>, scalar_prefetch = 0 : i64, scratch_operands = 0 : i64, tpu.core_type = #tpu.core_type<tc>, window_params = [{transform_indices = @transform_0, window_bounds = array<i64: 1, 64, 128>}, {pipeline_mode = #tpu.pipeline_mode<synchronous>, transform_indices = @transform_1, window_bounds = array<i64: 16, 64>}, {pipeline_mode = #tpu.pipeline_mode<synchronous>, transform_indices = @transform_2, window_bounds = array<i64: 1, 16>}, {pipeline_mode = #tpu.pipeline_mode<synchronous>, transform_indices = @transform_3, window_bounds = array<i64: 64, 16>}, {pipeline_mode = #tpu.pipeline_mode<synchronous>, transform_indices = @transform_4, window_bounds = array<i64: 1, 64>}, {transform_indices = @transform_5, window_bounds = array<i64: 1, 64, 128>}]} {
    %c0 = arith.constant 0 : index
    %c0_0 = arith.constant 0 : index
    %c0_1 = arith.constant 0 : index
    %0 = vector.load %arg1[%c0, %c0_0, %c0_1] : memref<1x64x128xf32, #tpu.memory_space<vmem>>, vector<1x64x128xf32>
    %cst = arith.constant dense<0.000000e+00> : vector<1x64xf32>
    %1 = vector.multi_reduction <add>, %0, %cst [2] : vector<1x64x128xf32> to vector<1x64xf32>
    %c0_2 = arith.constant 0 : index
    %c0_3 = arith.constant 0 : index
    %2 = vector.load %arg2[%c0_2, %c0_3] : memref<16x64xf32, #tpu.memory_space<vmem>>, vector<16x64xf32>
    %cst_4 = arith.constant dense<0.000000e+00> : vector<1x16xf32>
    %3 = tpu.matmul %1, %2, %cst_4 {dimension_numbers = #tpu.dot_dimension_numbers<[1], [1], [0], [0], [0, 0, 1, 0], [], []>} : vector<1x64xf32>, vector<16x64xf32>, vector<1x16xf32> -> vector<1x16xf32>
    %c0_5 = arith.constant 0 : index
    %c0_6 = arith.constant 0 : index
    %4 = vector.load %arg3[%c0_5, %c0_6] : memref<1x16xf32, #tpu.memory_space<vmem>>, vector<1x16xf32>
    %5 = arith.addf %3, %4 : vector<1x16xf32>
    %cst_7 = arith.constant 0.000000e+00 : f32
    %6 = vector.broadcast %cst_7 : f32 to vector<1x16xf32>
    %7 = arith.maximumf %5, %6 : vector<1x16xf32>
    %c0_8 = arith.constant 0 : index
    %c0_9 = arith.constant 0 : index
    %8 = vector.load %arg4[%c0_8, %c0_9] : memref<64x16xf32, #tpu.memory_space<vmem>>, vector<64x16xf32>
    %cst_10 = arith.constant dense<0.000000e+00> : vector<1x64xf32>
    %9 = tpu.matmul %7, %8, %cst_10 {dimension_numbers = #tpu.dot_dimension_numbers<[1], [1], [0], [0], [0, 0, 1, 0], [], []>} : vector<1x16xf32>, vector<64x16xf32>, vector<1x64xf32> -> vector<1x64xf32>
    %c0_11 = arith.constant 0 : index
    %c0_12 = arith.constant 0 : index
    %10 = vector.load %arg5[%c0_11, %c0_12] : memref<1x64xf32, #tpu.memory_space<vmem>>, vector<1x64xf32>
    %11 = arith.addf %9, %10 : vector<1x64xf32>
    %12 = arith.negf %11 : vector<1x64xf32>
    %13 = math.exp %12 : vector<1x64xf32>
    %cst_13 = arith.constant 1.000000e+00 : f32
    %14 = vector.broadcast %cst_13 : f32 to vector<1x64xf32>
    %15 = arith.addf %14, %13 : vector<1x64xf32>
    %16 = arith.divf %14, %15 : vector<1x64xf32>
    %c0_14 = arith.constant 0 : index
    %c0_15 = arith.constant 0 : index
    %c0_16 = arith.constant 0 : index
    %17 = vector.load %arg1[%c0_14, %c0_15, %c0_16] : memref<1x64x128xf32, #tpu.memory_space<vmem>>, vector<1x64x128xf32>
    %18 = vector.shape_cast %16 : vector<1x64xf32> to vector<1x64x1xf32>
    %19 = vector.broadcast %18 : vector<1x64x1xf32> to vector<1x64x128xf32>
    %20 = arith.mulf %17, %19 : vector<1x64x128xf32>
    %c0_17 = arith.constant 0 : index
    %c0_18 = arith.constant 0 : index
    %c0_19 = arith.constant 0 : index
    %21 = vector.load %arg6[%c0_17, %c0_18, %c0_19] : memref<1x64x128xf32, #tpu.memory_space<vmem>>, vector<1x64x128xf32>
    tpu.vector_store %arg6[%c0_17, %c0_18, %c0_19], %20 {strides = array<i32>} : memref<1x64x128xf32, #tpu.memory_space<vmem>>, vector<1x64x128xf32>,
    return
  }
  func.func @transform_0(%arg0: i32) -> (i32, i32, i32) {
    %c0_i32 = arith.constant 0 : i32
    %c0_i32_0 = arith.constant 0 : i32
    %c0_i32_1 = arith.constant 0 : i32
    return %arg0, %c0_i32, %c0_i32_0 : i32, i32, i32
  }
  func.func @transform_1(%arg0: i32) -> (i32, i32) {
    %c0_i32 = arith.constant 0 : i32
    %c0_i32_0 = arith.constant 0 : i32
    %c0_i32_1 = arith.constant 0 : i32
    return %c0_i32, %c0_i32_0 : i32, i32
  }
  func.func @transform_2(%arg0: i32) -> (i32, i32) {
    %c0_i32 = arith.constant 0 : i32
    %c0_i32_0 = arith.constant 0 : i32
    %c0_i32_1 = arith.constant 0 : i32
    return %c0_i32, %c0_i32_0 : i32, i32
  }
  func.func @transform_3(%arg0: i32) -> (i32, i32) {
    %c0_i32 = arith.constant 0 : i32
    %c0_i32_0 = arith.constant 0 : i32
    %c0_i32_1 = arith.constant 0 : i32
    return %c0_i32, %c0_i32_0 : i32, i32
  }
  func.func @transform_4(%arg0: i32) -> (i32, i32) {
    %c0_i32 = arith.constant 0 : i32
    %c0_i32_0 = arith.constant 0 : i32
    %c0_i32_1 = arith.constant 0 : i32
    return %c0_i32, %c0_i32_0 : i32, i32
  }
  func.func @transform_5(%arg0: i32) -> (i32, i32, i32) {
    %c0_i32 = arith.constant 0 : i32
    %c0_i32_0 = arith.constant 0 : i32
    %c0_i32_1 = arith.constant 0 : i32
    return %arg0, %c0_i32, %c0_i32_0 : i32, i32, i32
  }
}

</mosaic_0001>

<llo_original>
// kernel: tpu_custom_call.1
$region0: #{tpu_custom_call.1}
  #allocation0 [shape = 'u32[]', space=smem, size = 0x4, offset = 0x4, fixed_abs, tag = 'smem constant byte address 0x4 - core index']
  #allocation1 [shape = 'u32[72,128]{1,0:T(1,128)}', space=vmem, size = 0x9000, scoped, tag = 'internal scratch']
  %s0 = inlined_call_operand.hbm [shape: f32[8,64,128], index: 0, kind: input, shape index: {}]
  %s1 = inlined_call_operand.vmem [shape: f32[16,64], index: 1, kind: input, shape index: {}]
  %s2 = inlined_call_operand.vmem [shape: f32[1,16], index: 2, kind: input, shape index: {}]
  %s3 = inlined_call_operand.vmem [shape: f32[64,16], index: 3, kind: input, shape index: {}]
  %s4 = inlined_call_operand.vmem [shape: f32[1,64], index: 4, kind: input, shape index: {}]
  %s5 = inlined_call_operand.hbm [shape: f32[8,64,128], index: 5, kind: output, shape index: {}]
  %s6 = sld [smem:[#allocation0]]
  $region57: #{tpu_custom_call.1} parent=0
    _
  %s8 = ssub.s32 1, %s6
  %s9 = scalar_select 0, %s8, %s6
  $region1: #{tpu_custom_call.1} parent=0
    #allocation2 [shape = 'u8[65536]{0}', space=vmem, size = 0x10000, scoped, tag = 'input window, operand 0']
    #allocation3 [shape = 's32[2]{0}', space=sflag, size = 0x8, scoped, tag = 'scoped memory for tpu_custom_call.1']
    #allocation4 [shape = 's32[2]{0}', space=sflag, size = 0x8, scoped, tag = 'scoped memory for tpu_custom_call.1']
    #allocation5 [shape = 'u8[65536]{0}', space=vmem, size = 0x10000, scoped, tag = 'output window, operand 0']
    %10 = vsyncpa [#allocation3], 0
    %s11 = scalar_lea.sflag [#allocation3], 1
    %12 = vsyncpa %s11, 0
    %13 = vsyncpa [#allocation4], 0
    %s14 = scalar_lea.sflag [#allocation4], 1
    %15 = vsyncpa %s14, 0
    loop: start=0, step=1, limit=10
    $region2: #{tpu_custom_call.1} parent=1 // loop_pre_header
      _
    $region3: #{tpu_custom_call.1} parent=1 // loop_header
      %s17 = sphi 0, %s21
      %p18 = scmp.ge.s32.totalorder %s17, 10
      %s27 = sphi 0, %s29
      %s30 = sphi 0, %s27
      %s31 = sphi 0, %s30
      %s47 = sphi 0, %s31
      %s51 = sphi 0, %s51
      %s53 = sphi 0, %s51
      %s54 = sphi 0, %s53
      %s68 = sphi 0, %s54
      %s72 = sphi 0, %s72
      %s74 = sphi 0, %s72
      %s75 = sphi 0, %s74
      %s89 = sphi 0, %s75
      %s93 = sphi 0, %s93
      %s95 = sphi 0, %s93
      %s96 = sphi 0, %s95
      %s110 = sphi 0, %s96
      %s114 = sphi 0, %s114
      %s116 = sphi 0, %s114
      %s117 = sphi 0, %s116
      %s131 = sphi 0, %s117
      %s137 = sphi 0, %s139
      %s140 = sphi 0, %s137
      %s141 = sphi 0, %s140
      %s157 = sphi 0, %s141
    $region4: #{tpu_custom_call.1} parent=1 // loop_header_branch
      %20 = sbr.rel (%p18) target = $region8
    $region5: #{tpu_custom_call.1} parent=1 // loop_body
      %s22 = ssub.s32 %s17, 1
      %s23 = ssub.s32 %s17, 2
      %s24 = sadd.s32 %s17, 1
      %s25 = ssub.s32 %s17, %s24
      %p26 = scmp.eq.s32.totalorder %s25, 0
      %s28 = sadd.s32 %s27, 1
      %s29 = scalar_select %p26, %s27, %s28
      %p32 = pneg %p26
      %p33 = scmp.eq.s32.totalorder %s17, 7
      %p34 = por %p32, %p33
      %p35 = scmp.ne.s32.totalorder %s27, %s30
      %p36 = scmp.eq.s32.totalorder %s17, 0
      %p37 = por %p35, %p36
      %p38 = scmp.ne.s32.totalorder %s27, %s30
      %p39 = scmp.eq.s32.totalorder %s22, 7
      %p40 = por %p38, %p39
      %p41 = scmp.ne.s32.totalorder %s30, %s31
      %p42 = scmp.eq.s32.totalorder %s22, 0
      %p43 = por %p41, %p42
      %p44 = scmp.ne.s32.totalorder %s30, %s31
      %p45 = scmp.eq.s32.totalorder %s23, 7
      %p46 = por %p44, %p45
      %p48 = scmp.ne.s32.totalorder %s31, %s47
      %p49 = scmp.eq.s32.totalorder %s23, 0
      %p50 = por %p48, %p49
      %s52 = sadd.s32 %s51, 1
      %p55 = scmp.eq.s32.totalorder %s17, 7
      %p56 = scmp.ne.s32.totalorder %s51, %s53
      %p57 = scmp.eq.s32.totalorder %s17, 0
      %p58 = por %p56, %p57
      %p59 = scmp.ne.s32.totalorder %s51, %s53
      %p60 = scmp.eq.s32.totalorder %s22, 7
      %p61 = por %p59, %p60
      %p62 = scmp.ne.s32.totalorder %s53, %s54
      %p63 = scmp.eq.s32.totalorder %s22, 0
      %p64 = por %p62, %p63
      %p65 = scmp.ne.s32.totalorder %s53, %s54
      %p66 = scmp.eq.s32.totalorder %s23, 7
      %p67 = por %p65, %p66
      %p69 = scmp.ne.s32.totalorder %s54, %s68
      %p70 = scmp.eq.s32.totalorder %s23, 0
      %p71 = por %p69, %p70
      %s73 = sadd.s32 %s72, 1
      %p76 = scmp.eq.s32.totalorder %s17, 7
      %p77 = scmp.ne.s32.totalorder %s72, %s74
      %p78 = scmp.eq.s32.totalorder %s17, 0
      %p79 = por %p77, %p78
      %p80 = scmp.ne.s32.totalorder %s72, %s74
      %p81 = scmp.eq.s32.totalorder %s22, 7
      %p82 = por %p80, %p81
      %p83 = scmp.ne.s32.totalorder %s74, %s75
      %p84 = scmp.eq.s32.totalorder %s22, 0
      %p85 = por %p83, %p84
      %p86 = scmp.ne.s32.totalorder %s74, %s75
      %p87 = scmp.eq.s32.totalorder %s23, 7
      %p88 = por %p86, %p87
      %p90 = scmp.ne.s32.totalorder %s75, %s89
      %p91 = scmp.eq.s32.totalorder %s23, 0
      %p92 = por %p90, %p91
      %s94 = sadd.s32 %s93, 1
      %p97 = scmp.eq.s32.totalorder %s17, 7
      %p98 = scmp.ne.s32.totalorder %s93, %s95
      %p99 = scmp.eq.s32.totalorder %s17, 0
      %p100 = por %p98, %p99
      %p101 = scmp.ne.s32.totalorder %s93, %s95
      %p102 = scmp.eq.s32.totalorder %s22, 7
      %p103 = por %p101, %p102
      %p104 = scmp.ne.s32.totalorder %s95, %s96
      %p105 = scmp.eq.s32.totalorder %s22, 0
      %p106 = por %p104, %p105
      %p107 = scmp.ne.s32.totalorder %s95, %s96
      %p108 = scmp.eq.s32.totalorder %s23, 7
      %p109 = por %p107, %p108
      %p111 = scmp.ne.s32.totalorder %s96, %s110
      %p112 = scmp.eq.s32.totalorder %s23, 0
      %p113 = por %p111, %p112
      %s115 = sadd.s32 %s114, 1
      %p118 = scmp.eq.s32.totalorder %s17, 7
      %p119 = scmp.ne.s32.totalorder %s114, %s116
      %p120 = scmp.eq.s32.totalorder %s17, 0
      %p121 = por %p119, %p120
      %p122 = scmp.ne.s32.totalorder %s114, %s116
      %p123 = scmp.eq.s32.totalorder %s22, 7
      %p124 = por %p122, %p123
      %p125 = scmp.ne.s32.totalorder %s116, %s117
      %p126 = scmp.eq.s32.totalorder %s22, 0
      %p127 = por %p125, %p126
      %p128 = scmp.ne.s32.totalorder %s116, %s117
      %p129 = scmp.eq.s32.totalorder %s23, 7
      %p130 = por %p128, %p129
      %p132 = scmp.ne.s32.totalorder %s117, %s131
      %p133 = scmp.eq.s32.totalorder %s23, 0
      %p134 = por %p132, %p133
      %s135 = ssub.s32 %s17, %s24
      %p136 = scmp.eq.s32.totalorder %s135, 0
      %s138 = sadd.s32 %s137, 1
      %s139 = scalar_select %p136, %s137, %s138
      %p142 = pneg %p136
      %p143 = scmp.eq.s32.totalorder %s17, 7
      %p144 = por %p142, %p143
      %p145 = scmp.ne.s32.totalorder %s137, %s140
      %p146 = scmp.eq.s32.totalorder %s17, 0
      %p147 = por %p145, %p146
      %p148 = scmp.ne.s32.totalorder %s137, %s140
      %p149 = scmp.eq.s32.totalorder %s22, 7
      %p150 = por %p148, %p149
      %p151 = scmp.ne.s32.totalorder %s140, %s141
      %p152 = scmp.eq.s32.totalorder %s22, 0
      %p153 = por %p151, %p152
      %p154 = scmp.ne.s32.totalorder %s140, %s141
      %p155 = scmp.eq.s32.totalorder %s23, 7
      %p156 = por %p154, %p155
      %p158 = scmp.ne.s32.totalorder %s141, %s157
      %p159 = scmp.eq.s32.totalorder %s23, 0
      %p160 = por %p158, %p159
      %p161 = scmp.le.s32.totalorder 1, %s17
      %p162 = scmp.lt.s32.totalorder %s17, 9
      %p163 = pnand %p161, %p162
      %p164 = pneg %p163
      // Predicated region
      $region9: #{tpu_custom_call.1} parent=5 // pred_check
        _
      $region10: #{tpu_custom_call.1} parent=5 // pred_check_branch
        %166 = sbr.rel (%p163) target = $region12
      $region11: #{tpu_custom_call.1} parent=5 // pred_region
        %s167 = ssub.s32 %s17, 1
        // Predicated region
        $region13: #{tpu_custom_call.1} parent=11 // pred_check
          %p168 = pneg %p64
        $region14: #{tpu_custom_call.1} parent=11 // pred_check_branch
          %170 = sbr.rel (%p168) target = $region16
        $region15: #{tpu_custom_call.1} parent=11 // pred_region
          _
        $region16: #{tpu_custom_call.1} parent=11 // pred_fallthru
          _
        // Predicated region
        $region17: #{tpu_custom_call.1} parent=11 // pred_check
          %p171 = pneg %p85
        $region18: #{tpu_custom_call.1} parent=11 // pred_check_branch
          %173 = sbr.rel (%p171) target = $region20
        $region19: #{tpu_custom_call.1} parent=11 // pred_region
          _
        $region20: #{tpu_custom_call.1} parent=11 // pred_fallthru
          _
        // Predicated region
        $region21: #{tpu_custom_call.1} parent=11 // pred_check
          %p174 = pneg %p106
        $region22: #{tpu_custom_call.1} parent=11 // pred_check_branch
          %176 = sbr.rel (%p174) target = $region24
        $region23: #{tpu_custom_call.1} parent=11 // pred_region
          _
        $region24: #{tpu_custom_call.1} parent=11 // pred_fallthru
          _
        // Predicated region
        $region25: #{tpu_custom_call.1} parent=11 // pred_check
          %p177 = pneg %p127
        $region26: #{tpu_custom_call.1} parent=11 // pred_check_branch
          %179 = sbr.rel (%p177) target = $region28
        $region27: #{tpu_custom_call.1} parent=11 // pred_region
          _
        $region28: #{tpu_custom_call.1} parent=11 // pred_fallthru
          _
      $region12: #{tpu_custom_call.1} parent=5 // pred_fallthru
        _
      %p180 = scmp.lt.s32.totalorder %s17, 8
      // Predicated region
      $region29: #{tpu_custom_call.1} parent=5 // pred_check
        %p181 = pneg %p180
      $region30: #{tpu_custom_call.1} parent=5 // pred_check_branch
        %183 = sbr.rel (%p181) target = $region32
      $region31: #{tpu_custom_call.1} parent=5 // pred_region
        // Predicated region
        $region33: #{tpu_custom_call.1} parent=31 // pred_check
          %p184 = pneg %p37
        $region34: #{tpu_custom_call.1} parent=31 // pred_check_branch
          %186 = sbr.rel (%p184) target = $region36
        $region35: #{tpu_custom_call.1} parent=31 // pred_region
          %s187 = sand.u32 %s27, 1
          %s188 = scalar_lea.sflag [#allocation3], %s187
          %s189 = sand.u32 %s27, 1
          %s190 = smul.addr %s189, 64
          %s191 = scalar_lea.vmem [#allocation2], %s190
          %193 = vsyncadd %s188, 0
          %s194 = smul.addr %s17, 8
          %s195 = smul.addr %s194, 8
          %s196 = scalar_lea.hbm %s0, %s195
          %s197 = sshll.u32 %s196, 4
          %s198 = int_to_ptr.hbm [resolvable:$true] %s197
          %s199 = sshll.u32 %s191, 4
          %s200 = int_to_ptr.vmem [resolvable:$true] %s199
          %205 = dma.hbm_to_vmem [thread:$0]  %s198, 1024, %s200, %s188, 128, 128, 8
        $region36: #{tpu_custom_call.1} parent=31 // pred_fallthru
          _
      $region32: #{tpu_custom_call.1} parent=5 // pred_fallthru
        _
      %p206 = scmp.le.s32.totalorder 1, %s17
      %p207 = scmp.lt.s32.totalorder %s17, 9
      %p208 = pnand %p206, %p207
      %p209 = pneg %p208
      // Predicated region
      $region37: #{tpu_custom_call.1} parent=5 // pred_check
        _
      $region38: #{tpu_custom_call.1} parent=5 // pred_check_branch
        %211 = sbr.rel (%p208) target = $region40
      $region39: #{tpu_custom_call.1} parent=5 // pred_region
        %s212 = ssub.s32 %s17, 1
        %s213 = sand.u32 %s30, 1
        %s214 = scalar_lea.sflag [#allocation3], %s213
        %s215 = sand.u32 %s30, 1
        %s216 = smul.addr %s215, 64
        %s217 = scalar_lea.vmem [#allocation2], %s216
        // Predicated region
        $region41: #{tpu_custom_call.1} parent=39 // pred_check
          %p218 = pneg %p43
        $region42: #{tpu_custom_call.1} parent=39 // pred_check_branch
          %220 = sbr.rel (%p218) target = $region44
        $region43: #{tpu_custom_call.1} parent=39 // pred_region
          %222 = dma.done %s214, 1024
        $region44: #{tpu_custom_call.1} parent=39 // pred_fallthru
          _
        %s223 = sand.u32 %s30, 1
        %s224 = scalar_lea.sflag [#allocation3], %s223
        %s225 = sand.u32 %s30, 1
        %s226 = smul.addr %s225, 64
        %s227 = scalar_lea.vmem [#allocation2], %s226
        %p228 = pneg %p43
        %p229 = pneg %p40
        %p230 = pneg %p64
        %p231 = pneg %p61
        %p232 = pneg %p85
        %p233 = pneg %p82
        %p234 = pneg %p106
        %p235 = pneg %p103
        %p236 = pneg %p127
        %p237 = pneg %p124
        %p238 = pneg %p153
        %p239 = pneg %p150
        %s240 = sand.u32 %s140, 1
        %s241 = scalar_lea.sflag [#allocation4], %s240
        %s242 = sand.u32 %s140, 1
        %s243 = smul.addr %s242, 64
        %s244 = scalar_lea.vmem [#allocation5], %s243
        %v245 = vld [vmem:[%s217] sm:$0xff]
        %v246 = vld [vmem:[%s217 + $0x8] sm:$0xff]
        %v247 = vld [vmem:[%s217 + $0x10] sm:$0xff]
        %v248 = vld [vmem:[%s217 + $0x18] sm:$0xff]
        %v249 = vld [vmem:[%s217 + $0x20] sm:$0xff]
        %v250 = vld [vmem:[%s217 + $0x28] sm:$0xff]
        %v251 = vld [vmem:[%s217 + $0x30] sm:$0xff]
        %v252 = vld [vmem:[%s217 + $0x38] sm:$0xff]
        %253 = vadd.xlane.f32.xlu0 %v245
        %v254 = vpop.xlane.xlu0 %253
        %255 = vadd.xlane.f32.xlu0 %v246
        %v256 = vpop.xlane.xlu0 %255
        %257 = vadd.xlane.f32.xlu0 %v247
        %v258 = vpop.xlane.xlu0 %257
        %259 = vadd.xlane.f32.xlu0 %v248
        %v260 = vpop.xlane.xlu0 %259
        %261 = vadd.xlane.f32.xlu0 %v249
        %v262 = vpop.xlane.xlu0 %261
        %263 = vadd.xlane.f32.xlu0 %v250
        %v264 = vpop.xlane.xlu0 %263
        %265 = vadd.xlane.f32.xlu0 %v251
        %v266 = vpop.xlane.xlu0 %265
        %267 = vadd.xlane.f32.xlu0 %v252
        %v268 = vpop.xlane.xlu0 %267
        %v269 = vld [vmem:[%s1] sm:$0xff]
        %v270 = vld [vmem:[%s1 + $0x8] sm:$0xff]
        %v271 = vld [vmem:[%s2] sm:$0x1]
        %v280 = vlaneseq
        %v281 = vand.u32 %v280, 127
        %v282 = vperm.slane %v254, %v281
        %v283 = vadd.s32 %v281, 4294967288
        %v284 = vperm.slane %v256, %v283
        %vm285 = vcmask 130112
        %v286 = vsel %vm285, %v284, %v282
        %v287 = vadd.s32 %v281, 4294967280
        %v288 = vperm.slane %v258, %v287
        %vm289 = vcmask 195712
        %v290 = vsel %vm289, %v288, %v286
        %v291 = vadd.s32 %v281, 4294967272
        %v292 = vperm.slane %v260, %v291
        %vm293 = vcmask 261312
        %v294 = vsel %vm293, %v292, %v290
        %v295 = vadd.s32 %v281, 4294967264
        %v296 = vperm.slane %v262, %v295
        %vm297 = vcmask 326912
        %v298 = vsel %vm297, %v296, %v294
        %v299 = vadd.s32 %v281, 4294967256
        %v300 = vperm.slane %v264, %v299
        %vm301 = vcmask 392512
        %v302 = vsel %vm301, %v300, %v298
        %v303 = vadd.s32 %v281, 4294967248
        %v304 = vperm.slane %v266, %v303
        %vm305 = vcmask 458112
        %v306 = vsel %vm305, %v304, %v302
        %v307 = vadd.s32 %v281, 4294967240
        %v308 = vperm.slane %v268, %v307
        %vm309 = vcmask 523712
        %v310 = vsel %vm309, %v308, %v306
        %vm311 = vcmask 523264
        %v312 = vsel %vm311, %v310, 0
        %v315 = vsel %vm311, %v269, 0
        %v318 = vsel %vm311, %v270, 0
        %320 = vmatpush.xpose.msra.mxu0 0.0
        %321 = vmatpush.xpose.msra.mxu0 0.0
        %322 = vmatpush.xpose.msra.mxu0 0.0
        %323 = vmatpush.xpose.msra.mxu0 0.0
        %324 = vmatpush.xpose.msra.mxu0 0.0
        %325 = vmatpush.xpose.msra.mxu0 0.0
        %326 = vmatpush.xpose.msra.mxu0 0.0
        %327 = vmatpush.xpose.msra.mxu0 0.0
        %328 = vmatpush.xpose.msra.mxu0 0.0
        %329 = vmatpush.xpose.msra.mxu0 0.0
        %330 = vmatpush.xpose.msra.mxu0 0.0
        %331 = vmatpush.xpose.msra.mxu0 0.0
        %332 = vmatpush.xpose.msra.mxu0 0.0
        %333 = vmatpush.xpose.msra.mxu0 0.0
        %334 = vmatpush.xpose.msra.mxu0 %v318
        %335 = vmatpush.xpose.msra.mxu0 %v315
        %336 = vmatmul.f32.gmra.mxu0 %v312
        %v337 = vpop.f32.mrf.mxu0
        %v338 = vadd.f32 %v271, %v337
        %339 = vdwg.mxu0
        %v340 = vmax.f32 %v338, 0.0
        %v341 = vld [vmem:[%s3] sm:$0xff]
        %v342 = vld [vmem:[%s3 + $0x8] sm:$0xff]
        %v343 = vld [vmem:[%s3 + $0x10] sm:$0xff]
        %v344 = vld [vmem:[%s3 + $0x18] sm:$0xff]
        %v345 = vld [vmem:[%s3 + $0x20] sm:$0xff]
        %v346 = vld [vmem:[%s3 + $0x28] sm:$0xff]
        %v347 = vld [vmem:[%s3 + $0x30] sm:$0xff]
        %v348 = vld [vmem:[%s3 + $0x38] sm:$0xff]
        %v349 = vld [vmem:[%s4] sm:$0x1]
        %vm350 = vcmask 130048
        %v352 = vsel %vm350, %v340, 0
        %v355 = vsel %vm350, %v341, 0
        %v358 = vsel %vm350, %v342, 0
        %v361 = vsel %vm350, %v343, 0
        %v364 = vsel %vm350, %v344, 0
        %v367 = vsel %vm350, %v345, 0
        %v370 = vsel %vm350, %v346, 0
        %v373 = vsel %vm350, %v347, 0
        %v376 = vsel %vm350, %v348, 0
        %378 = vmatpush.xpose.msra.mxu0 0.0
        %379 = vmatpush.xpose.msra.mxu0 0.0
        %380 = vmatpush.xpose.msra.mxu0 0.0
        %381 = vmatpush.xpose.msra.mxu0 0.0
        %382 = vmatpush.xpose.msra.mxu0 0.0
        %383 = vmatpush.xpose.msra.mxu0 0.0
        %384 = vmatpush.xpose.msra.mxu0 0.0
        %385 = vmatpush.xpose.msra.mxu0 0.0
        %386 = vmatpush.xpose.msra.mxu0 %v376
        %387 = vmatpush.xpose.msra.mxu0 %v373
        %388 = vmatpush.xpose.msra.mxu0 %v370
        %389 = vmatpush.xpose.msra.mxu0 %v367
        %390 = vmatpush.xpose.msra.mxu0 %v364
        %391 = vmatpush.xpose.msra.mxu0 %v361
        %392 = vmatpush.xpose.msra.mxu0 %v358
        %393 = vmatpush.xpose.msra.mxu0 %v355
        %394 = vmatmul.f32.gmra.mxu0 %v352
        %v395 = vpop.f32.mrf.mxu0
        %v396 = vadd.f32 %v349, %v395
        %397 = vdwg.mxu0
        %v398 = vxor.u32 %v396, 2147483648
        %v399 = vmul.f32 %v398, 1.442695
        %v400 = vpow.pop %v399
        %v401 = vadd.f32 %v400, 1.0
        %v402 = vrcp.pop %v401
        %v403 = vmul.f32 %v401, %v402
        %v404 = vsub.f32 1.0, %v403
        %v405 = vmul.f32 %v402, %v404
        %v406 = vadd.f32 %v402, %v405
        %vm407 = vweird.f32 %v401
        %vm408 = vweird.f32 %v402
        %vm409 = vmor %vm407, %vm408
        %v410 = vsel %vm409, %v402, %v406
        %v411 = vand.u32 2147483647, %v401
        %vm412 = vcmp.eq.f32.partialorder %v411, 8.507059e+37
        %v413 = vand.u32 %v401, 2147483648
        %v414 = vor.u32 1.1754944e-38, %v413
        %v415 = vsel %vm412, %v414, %v410
        %v416 = vmul.f32 1.0, %v415
        %v417 = vperm.slane %v416, 0
        %v418 = vlaneseq
        %v419 = vshrl.u32 %v418, 7
        %421 = vset.pattern.permute.xlu0 %v419
        %422 = vperm.xlu0 %421, %v417
        %v423 = vpop.permute.xlu0 %422
        %v424 = vlaneseq
        %v425 = vshrl.u32 %v424, 7
        %v426 = vadd.s32 %v425, 8
        %427 = vset.pattern.permute.xlu0 %v426
        %428 = vperm.xlu0 %427, %v417
        %v429 = vpop.permute.xlu0 %428
        %v430 = vlaneseq
        %v431 = vshrl.u32 %v430, 7
        %v432 = vadd.s32 %v431, 16
        %433 = vset.pattern.permute.xlu0 %v432
        %434 = vperm.xlu0 %433, %v417
        %v435 = vpop.permute.xlu0 %434
        %v436 = vlaneseq
        %v437 = vshrl.u32 %v436, 7
        %v438 = vadd.s32 %v437, 24
        %439 = vset.pattern.permute.xlu0 %v438
        %440 = vperm.xlu0 %439, %v417
        %v441 = vpop.permute.xlu0 %440
        %v442 = vlaneseq
        %v443 = vshrl.u32 %v442, 7
        %v444 = vadd.s32 %v443, 32
        %445 = vset.pattern.permute.xlu0 %v444
        %446 = vperm.xlu0 %445, %v417
        %v447 = vpop.permute.xlu0 %446
        %v448 = vlaneseq
        %v449 = vshrl.u32 %v448, 7
        %v450 = vadd.s32 %v449, 40
        %451 = vset.pattern.permute.xlu0 %v450
        %452 = vperm.xlu0 %451, %v417
        %v453 = vpop.permute.xlu0 %452
        %v454 = vlaneseq
        %v455 = vshrl.u32 %v454, 7
        %v456 = vadd.s32 %v455, 48
        %457 = vset.pattern.permute.xlu0 %v456
        %458 = vperm.xlu0 %457, %v417
        %v459 = vpop.permute.xlu0 %458
        %v460 = vlaneseq
        %v461 = vshrl.u32 %v460, 7
        %v462 = vadd.s32 %v461, 56
        %463 = vset.pattern.permute.xlu0 %v462
        %464 = vperm.xlu0 %463, %v417
        %v465 = vpop.permute.xlu0 %464
        %v466 = vmul.f32 %v245, %v423
        %v467 = vmul.f32 %v246, %v429
        %v468 = vmul.f32 %v247, %v435
        %v469 = vmul.f32 %v248, %v441
        %v470 = vmul.f32 %v249, %v447
        %v471 = vmul.f32 %v250, %v453
        %v472 = vmul.f32 %v251, %v459
        %v473 = vmul.f32 %v252, %v465
        %474 = vst [vmem:[%s244] sm:$0xff] %v466
        %475 = vst [vmem:[%s244 + $0x8] sm:$0xff] %v467
        %476 = vst [vmem:[%s244 + $0x10] sm:$0xff] %v468
        %477 = vst [vmem:[%s244 + $0x18] sm:$0xff] %v469
        %478 = vst [vmem:[%s244 + $0x20] sm:$0xff] %v470
        %479 = vst [vmem:[%s244 + $0x28] sm:$0xff] %v471
        %480 = vst [vmem:[%s244 + $0x30] sm:$0xff] %v472
        %481 = vst [vmem:[%s244 + $0x38] sm:$0xff] %v473
        %s482 = sand.u32 %s140, 1
        %s483 = scalar_lea.sflag [#allocation4], %s482
        %s484 = sand.u32 %s140, 1
        %s485 = smul.addr %s484, 64
        %s486 = scalar_lea.vmem [#allocation5], %s485
        // Predicated region
        $region45: #{tpu_custom_call.1} parent=39 // pred_check
          %p487 = pneg %p150
        $region46: #{tpu_custom_call.1} parent=39 // pred_check_branch
          %489 = sbr.rel (%p487) target = $region48
        $region47: #{tpu_custom_call.1} parent=39 // pred_region
          %491 = vsyncadd %s483, 0
          %s492 = smul.addr %s22, 8
          %s493 = smul.addr %s492, 8
          %s494 = scalar_lea.hbm %s5, %s493
          %s495 = sshll.u32 %s486, 4
          %s496 = int_to_ptr.vmem [resolvable:$true] %s495
          %s497 = sshll.u32 %s494, 4
          %s498 = int_to_ptr.hbm [resolvable:$true] %s497
          %503 = dma.vmem_to_hbm [thread:$0]  %s496, 1024, %s498, %s483, 128, 128, 8
        $region48: #{tpu_custom_call.1} parent=39 // pred_fallthru
          _
      $region40: #{tpu_custom_call.1} parent=5 // pred_fallthru
        _
      %p504 = scmp.le.s32.totalorder 2, %s17
      // Predicated region
      $region49: #{tpu_custom_call.1} parent=5 // pred_check
        %p505 = pneg %p504
      $region50: #{tpu_custom_call.1} parent=5 // pred_check_branch
        %507 = sbr.rel (%p505) target = $region52
      $region51: #{tpu_custom_call.1} parent=5 // pred_region
        %s508 = ssub.s32 %s17, 2
        // Predicated region
        $region53: #{tpu_custom_call.1} parent=51 // pred_check
          %p509 = pneg %p156
        $region54: #{tpu_custom_call.1} parent=51 // pred_check_branch
          %511 = sbr.rel (%p509) target = $region56
        $region55: #{tpu_custom_call.1} parent=51 // pred_region
          %s512 = sand.u32 %s141, 1
          %s513 = scalar_lea.sflag [#allocation4], %s512
          %s514 = sand.u32 %s141, 1
          %s515 = smul.addr %s514, 64
          %s516 = scalar_lea.vmem [#allocation5], %s515
          %518 = dma.done %s513, 1024
        $region56: #{tpu_custom_call.1} parent=51 // pred_fallthru
          _
      $region52: #{tpu_custom_call.1} parent=5 // pred_fallthru
        _
    $region6: #{tpu_custom_call.1} parent=1 // loop_footer
      %s21 = sadd.s32 1, %s17
    $region7: #{tpu_custom_call.1} parent=1 // loop_footer_branch
      %16 = sbr.rel target = $region3
    $region8: #{tpu_custom_call.1} parent=1 // loop_exit
      _
    %519 = vsyncpa [#allocation3], 1
    %s520 = scalar_lea.sflag [#allocation3], 1
    %521 = vsyncpa %s520, 1
    %522 = vsyncpa [#allocation4], 1
    %s523 = scalar_lea.sflag [#allocation4], 1
    %524 = vsyncpa %s523, 1

</llo_original>
